<compile_context>
chip_gen: v7x
topology: tpu7x:2x2x1
jax: 0.10.0
libtpu: 0.0.40
codegen_flags: <defaults>
</compile_context>

<pallas_src>
import jax
import jax.numpy as jnp
from jax.experimental import pallas as pl
from jax.experimental.pallas import tpu as pltpu


# Large finite negative (same trick as the reference flash kernels): avoids any
# inf - inf = NaN risk in the online-softmax update while underflowing to exact
# zero probability after exp().
DEFAULT_MASK_VALUE = -0.7 * float(jnp.finfo(jnp.float32).max)


# ----------------------------- helpers ------------------------------------- #

def _largest_divisor_at_most(n, cap):
    cap = int(max(1, min(n, cap)))
    for d in range(cap, 0, -1):
        if n % d == 0:
            return d
    return 1


def _vmem_capacity_bytes():
    # Scale working-set / scoped-VMEM budgets with the generation
    # (v5e/v6e: 128 MiB, v7x: 64 MiB) instead of a hard-coded constant.
    try:
        return int(pltpu.get_tpu_info().vmem_capacity_bytes)
    except Exception:
        return 64 * 1024 * 1024      # conservative (v7x-sized) fallback


def _budgets():
    cap = _vmem_capacity_bytes()
    # ~1/6 of physical VMEM as the (double-buffer-counted) working-set target:
    # ~21 MiB on v5e/v6e, ~10 MiB on v7x.  Scoped limit at 3/4 of capacity:
    # 96 MiB on v5e/v6e, 48 MiB on v7x.
    return cap // 6, (cap * 3) // 4


def _pick_seq_tile(T):
    # 256 keeps v6e/v7x's 256-wide MXU full; 128 is the v5e-native size.
    # Small / odd T: one tile covers the whole sequence.
    # TODO(synk): prefer 128-wide tiles on v5e (128x128 MXUs) and spend the
    # VMEM on a larger bt instead, once generation detection is exposed.
    for t in (256, 128):
        if T % t == 0:
            return t
    return T


def _pick_bt(B, per_bt_bytes, budget_bytes, fixed_bytes=0, min_grid_steps=1):
    avail = max(budget_bytes - fixed_bytes, per_bt_bytes)
    cap = max(1, avail // max(per_bt_bytes, 1))
    if min_grid_steps > 1 and B >= min_grid_steps:
        # Keep >= min_grid_steps parallel grid steps so both v7x TensorCores
        # get work (negligible extra ~0.35us/step on 1-TC v5e/v6e).
        cap = min(cap, B // min_grid_steps)
    return _largest_divisor_at_most(B, cap)


# --------------------------- stage 1: fused QKV ----------------------------- #

def _qkv_fused_kernel(x_ref, w_ref, qkv_ref):
    bt, t, d_in = x_ref.shape
    # Batch folded into M: one (bt*T, D_in) @ (D_in, 3*D_out) MXU matmul.
    x2 = x_ref[...].reshape(bt * t, d_in)
    qkv = jnp.dot(x2, w_ref[...], preferred_element_type=jnp.float32)
    # Single lane-dense store; no in-kernel lane slicing / vst.msk triples.
    qkv_ref[...] = qkv.reshape(qkv_ref.shape).astype(qkv_ref.dtype)


def _qkv_split_kernel(x_ref, w_ref, q_ref, k_ref, v_ref):
    bt, t, d_in = x_ref.shape
    d_out = q_ref.shape[-1]
    x2 = x_ref[...].reshape(bt * t, d_in)
    qkv = jnp.dot(x2, w_ref[...], preferred_element_type=jnp.float32)
    # Only used when d_out % 128 == 0, so these lane slices are vreg-aligned.
    q_ref[...] = qkv[:, :d_out].reshape(q_ref.shape).astype(q_ref.dtype)
    k_ref[...] = qkv[:, d_out:2 * d_out].reshape(k_ref.shape).astype(k_ref.dtype)
    v_ref[...] = qkv[:, 2 * d_out:].reshape(v_ref.shape).astype(v_ref.dtype)


def _qkv_projection(x, w_qkv, d_out):
    """Returns (q, k, v), each (B, T, d_out), dtype = x.dtype.

    The softmax scale is already folded into the Q columns of w_qkv.
    """
    B, T, d_in = x.shape
    io_bytes = x.dtype.itemsize
    budget, vmem_limit = _budgets()

    # Per-bt working set (x2 for BlockSpec double-buffering) + f32 intermediates.
    per_bt = T * (2 * d_in * io_bytes + 2 * 3 * d_out * io_bytes + 3 * d_out * 4)
    fixed = 2 * d_in * 3 * d_out * w_qkv.dtype.itemsize   # resident weight (x2)
    bt = _pick_bt(B, per_bt, budget, fixed_bytes=fixed, min_grid_steps=2)

    grid = (B // bt,)
    x_spec = pl.BlockSpec((bt, T, d_in), lambda b: (b, 0, 0))
    # TODO(synk): on v7x, pipeline_mode=pl.Buffered(1) on the weight spec would
    # halve its residency (constant index_map -> no re-DMA needed anyway).
    w_spec = pl.BlockSpec((d_in, 3 * d_out), lambda b: (0, 0))
    params = pltpu.CompilerParams(
        dimension_semantics=("parallel",),
        vmem_limit_bytes=vmem_limit,
    )

    if d_out % 128 == 0:
        out = jax.ShapeDtypeStruct((B, T, d_out), x.dtype)
        q, k, v = pl.pallas_call(
            _qkv_split_kernel,
            out_shape=(out, out, out),
            grid_spec=pltpu.PrefetchScalarGridSpec(
                num_scalar_prefetch=0,
                grid=grid,
                in_specs=[x_spec, w_spec],
                out_specs=[
                    pl.BlockSpec((bt, T, d_out), lambda b: (b, 0, 0)),
                    pl.BlockSpec((bt, T, d_out), lambda b: (b, 0, 0)),
                    pl.BlockSpec((bt, T, d_out), lambda b: (b, 0, 0)),
                ],
            ),
            compiler_params=params,
        )(x, w_qkv)
        return q, k, v

    # d_out not lane-aligned: emit one lane-dense fused output and split it
    # outside the kernel (avoids three misaligned partial stores and in-kernel
    # vreg relayout copies).
    qkv = pl.pallas_call(
        _qkv_fused_kernel,
        out_shape=jax.ShapeDtypeStruct((B, T, 3 * d_out), x.dtype),
        grid_spec=pltpu.PrefetchScalarGridSpec(
            num_scalar_prefetch=0,
            grid=grid,
            in_specs=[x_spec, w_spec],
            out_specs=pl.BlockSpec((bt, T, 3 * d_out), lambda b: (b, 0, 0)),
        ),
        compiler_params=params,
    )(x, w_qkv)
    return (qkv[..., :d_out], qkv[..., d_out:2 * d_out], qkv[..., 2 * d_out:])


# ---------------------- stage 2: flash causal attention --------------------- #

def _flash_attn_kernel(q_ref, k_ref, v_ref, o_ref, m_sc, l_sc, acc_sc):
    qi = pl.program_id(1)
    ki = pl.program_id(2)
    tq = q_ref.shape[1]
    tk = k_ref.shape[1]

    @pl.when(ki == 0)
    def _():
        m_sc[...] = jnp.full(m_sc.shape, -jnp.inf, m_sc.dtype)
        l_sc[...] = jnp.zeros(l_sc.shape, l_sc.dtype)
        acc_sc[...] = jnp.zeros(acc_sc.shape, acc_sc.dtype)

    def _scores():
        # Batched contraction over d (no explicit k transpose).  bf16 inputs hit
        # the native MXU path; accumulation stays f32.
        return jnp.einsum('bqd,bkd->bqk', q_ref[...], k_ref[...],
                          preferred_element_type=jnp.float32)   # (bt, tq, tk)

    def _online_softmax_update(s):
        m_prev = m_sc[...]
        m_new = jnp.maximum(m_prev, s.max(axis=-1, keepdims=True))
        alpha = jnp.exp(m_prev - m_new)
        p = jnp.exp(s - m_new)
        l_sc[...] = alpha * l_sc[...] + p.sum(axis=-1, keepdims=True)
        acc_sc[...] = alpha * acc_sc[...] + jnp.einsum(
            'bqk,bkd->bqd', p.astype(v_ref.dtype), v_ref[...],
            preferred_element_type=jnp.float32)
        m_sc[...] = m_new

    # Below-diagonal kv tiles: fully unmasked -> no iota/compare/where VPU work.
    @pl.when(ki < qi)
    def _():
        _online_softmax_update(_scores())

    # Diagonal tile: the only tile that needs the causal mask (tq == tk, so the
    # tile-local row/col indices suffice — no global offsets needed).
    @pl.when(ki == qi)
    def _():
        s = _scores()
        row = jax.lax.broadcasted_iota(jnp.int32, (tq, tk), 0)
        col = jax.lax.broadcasted_iota(jnp.int32, (tq, tk), 1)
        s = jnp.where((col > row)[None, :, :], DEFAULT_MASK_VALUE, s)
        _online_softmax_update(s)

    # Above-diagonal tiles (ki > qi) are fully masked: no compute here, and the
    # clamped K/V index_maps mean no DMA is issued for them either.

    @pl.when(ki == pl.num_programs(2) - 1)
    def _():
        # TODO(synk): nn.Dropout on the attention weights is identity in eval
        # mode; training-mode dropout (pltpu.prng_random_bits) is not applied.
        o_ref[...] = (acc_sc[...] *
                      pl.reciprocal(l_sc[...], approx=True)).astype(o_ref.dtype)


def _flash_causal_attention(q, k, v, *, out_dtype):
    B, T, D = q.shape
    tq = tk = _pick_seq_tile(T)
    # Online-softmax NaN-safety (every processed row has >=1 unmasked element)
    # and the diagonal-only masking both rely on square seq tiles.
    assert tq == tk

    io_bytes = q.dtype.itemsize
    out_bytes = jnp.dtype(out_dtype).itemsize
    budget, vmem_limit = _budgets()

    # Per-bt working set: double-buffered q/k/v/o blocks + f32 scratch + s/p.
    per_bt = (2 * (tq + 2 * tk) * D * io_bytes     # q, k, v input blocks (x2)
              + 2 * tq * D * out_bytes             # o block (x2)
              + (2 * tq + tq * D) * 4              # m, l, acc scratch
              + 2 * tq * tk * 4)                   # s / p intermediates
    # Keep >= 2 parallel grid steps so both v7x TensorCores have work.
    min_steps = 2 if (T // tq) < 2 else 1
    bt = _pick_bt(B, per_bt, budget, min_grid_steps=min_steps)

    grid = (B // bt, T // tq, T // tk)
    return pl.pallas_call(
        _flash_attn_kernel,
        out_shape=jax.ShapeDtypeStruct((B, T, D), out_dtype),
        grid_spec=pltpu.PrefetchScalarGridSpec(
            num_scalar_prefetch=0,
            grid=grid,
            in_specs=[
                pl.BlockSpec((bt, tq, D), lambda b, qi, ki: (b, qi, 0)),
                # Clamp: fully-masked (above-diagonal) steps alias the diagonal
                # block -> block index unchanged -> Pallas issues no DMA for
                # the tiles the pl.when compute guard skips (~2x less K/V HBM
                # traffic).
                pl.BlockSpec((bt, tk, D),
                             lambda b, qi, ki: (b, jnp.minimum(ki, qi), 0)),
                pl.BlockSpec((bt, tk, D),
                             lambda b, qi, ki: (b, jnp.minimum(ki, qi), 0)),
            ],
            out_specs=pl.BlockSpec((bt, tq, D), lambda b, qi, ki: (b, qi, 0)),
            scratch_shapes=[
                pltpu.VMEM((bt, tq, 1), jnp.float32),   # running max m
                pltpu.VMEM((bt, tq, 1), jnp.float32),   # running denom l
                pltpu.VMEM((bt, tq, D), jnp.float32),   # output accumulator
            ],
        ),
        compiler_params=pltpu.CompilerParams(
            # batch / q-tile axes shard across TensorCores (v7x megacore); the
            # kv axis carries the online-softmax accumulator -> "arbitrary".
            dimension_semantics=("parallel", "parallel", "arbitrary"),
            vmem_limit_bytes=vmem_limit,
        ),
    )(q, k, v)


# ------------------------------ public wrapper ------------------------------ #

def causal_attention(x, wq, wk, wv, *, use_bf16=True):
    """x: (B, T, D_in); wq/wk/wv: (D_in, D_out) (nn.Linear weights transposed).

    use_bf16=True (default) runs both MXU stages in bfloat16 (native on
    v5e/v6e/v7x) with f32 accumulation and halves the q/k/v HBM round trip
    between stages; pass False for an all-f32 path.
    """
    d_out = wq.shape[1]
    # Fold the 1/sqrt(d_k) softmax scale into the Q weight columns (zero kernel
    # cost, and keeps the fused QKV output lane-dense).
    scale = 1.0 / float(d_out) ** 0.5
    w_qkv = jnp.concatenate([wq * scale, wk, wv], axis=1)   # (D_in, 3*D_out)
    x_in = x
    if use_bf16:
        x_in = x.astype(jnp.bfloat16)
        w_qkv = w_qkv.astype(jnp.bfloat16)
    else:
        w_qkv = w_qkv.astype(x.dtype)
    q, k, v = _qkv_projection(x_in, w_qkv, d_out)
    # TODO(synk): optionally fuse the K/V projection into the attention kernel
    # (keep w_k/w_v resident in VMEM) to remove the K/V HBM round trip entirely.
    return _flash_causal_attention(q, k, v, out_dtype=x.dtype)


def reference_causal_attention(x, wq, wk, wv):
    """Pure-JAX reference mirroring the PyTorch forward (dropout = identity)."""
    q = x @ wq
    k = x @ wk
    v = x @ wv
    scores = jnp.einsum("btd,bsd->bts", q, k)
    T = x.shape[1]
    mask = jnp.triu(jnp.ones((T, T), dtype=bool), k=1)
    masked = jnp.where(mask[None, :, :], -jnp.inf, scores)
    weights = jax.nn.softmax(masked / jnp.sqrt(jnp.float32(q.shape[-1])), axis=-1)
    return weights @ v


if __name__ == "__main__":
    key = jax.random.PRNGKey(0)
    B, T, D_in, D_out = 2, 8, 32, 32   # context_length >= T; dropout = eval identity

    k_x, k_q, k_k, k_v = jax.random.split(key, 4)
    x = jax.random.normal(k_x, (B, T, D_in), dtype=jnp.float32)
    # nn.Linear(dim_in, dim_out, bias=False): weight (dim_out, dim_in); store transposed.
    wq = (jax.random.normal(k_q, (D_out, D_in), dtype=jnp.float32) * 0.1).T
    wk = (jax.random.normal(k_k, (D_out, D_in), dtype=jnp.float32) * 0.1).T
    wv = (jax.random.normal(k_v, (D_out, D_in), dtype=jnp.float32) * 0.1).T

    out = causal_attention(x, wq, wk, wv)         # bf16 MXU path (default)
    out = jax.block_until_ready(out)

    ref = reference_causal_attention(x, wq, wk, wv)
    assert out.shape == (B, T, D_out)
    # Tolerance covers bf16 matmul inputs (f32 accumulation) + approx reciprocal.
    assert jnp.allclose(out, ref, atol=3e-2, rtol=3e-2), "bf16 path mismatch vs reference"

    # Also check the full-precision path more tightly.
    out_f32 = jax.block_until_ready(causal_attention(x, wq, wk, wv, use_bf16=False))
    assert jnp.allclose(out_f32, ref, atol=2e-3, rtol=2e-3), "f32 path mismatch vs reference"

    print("KERNEL_OK")
</pallas_src>

<mosaic_0001>
module attributes {stable_mosaic.version = 11 : i64} {
  func.func @_qkv_fused_kernel(%arg0: i32, %arg1: memref<1x8x32xbf16, #tpu.memory_space<vmem>>, %arg2: memref<32x96xbf16, #tpu.memory_space<vmem>>, %arg3: memref<1x8x96xbf16, #tpu.memory_space<vmem>>) attributes {dimension_semantics = [#tpu.dimension_semantics<parallel>], iteration_bounds = array<i64: 2>, scalar_prefetch = 0 : i64, scratch_operands = 0 : i64, tpu.core_type = #tpu.core_type<tc>, window_params = [{transform_indices = @transform_0, window_bounds = array<i64: 1, 8, 32>}, {pipeline_mode = #tpu.pipeline_mode<synchronous>, transform_indices = @transform_1, window_bounds = array<i64: 32, 96>}, {transform_indices = @transform_2, window_bounds = array<i64: 1, 8, 96>}]} {
    %c0 = arith.constant 0 : index
    %c0_0 = arith.constant 0 : index
    %c0_1 = arith.constant 0 : index
    %0 = vector.load %arg1[%c0, %c0_0, %c0_1] : memref<1x8x32xbf16, #tpu.memory_space<vmem>>, vector<1x8x32xbf16>
    %1 = vector.shape_cast %0 : vector<1x8x32xbf16> to vector<8x32xbf16>
    %c0_2 = arith.constant 0 : index
    %c0_3 = arith.constant 0 : index
    %2 = vector.load %arg2[%c0_2, %c0_3] : memref<32x96xbf16, #tpu.memory_space<vmem>>, vector<32x96xbf16>
    %cst = arith.constant dense<0.000000e+00> : vector<8x96xf32>
    %3 = tpu.matmul %1, %2, %cst {dimension_numbers = #tpu.dot_dimension_numbers<[1], [0], [0], [1], [0, 0, 1, 1], [], []>} : vector<8x32xbf16>, vector<32x96xbf16>, vector<8x96xf32> -> vector<8x96xf32>
    %4 = vector.shape_cast %3 : vector<8x96xf32> to vector<1x8x96xf32>
    %5 = arith.truncf %4 : vector<1x8x96xf32> to vector<1x8x96xbf16>
    %c0_4 = arith.constant 0 : index
    %c0_5 = arith.constant 0 : index
    %c0_6 = arith.constant 0 : index
    %6 = vector.load %arg3[%c0_4, %c0_5, %c0_6] : memref<1x8x96xbf16, #tpu.memory_space<vmem>>, vector<1x8x96xbf16>
    tpu.vector_store %arg3[%c0_4, %c0_5, %c0_6], %5 {strides = array<i32>} : memref<1x8x96xbf16, #tpu.memory_space<vmem>>, vector<1x8x96xbf16>,
    return
  }
  func.func @transform_0(%arg0: i32) -> (i32, i32, i32) {
    %c0_i32 = arith.constant 0 : i32
    %c0_i32_0 = arith.constant 0 : i32
    %c0_i32_1 = arith.constant 0 : i32
    return %arg0, %c0_i32, %c0_i32_0 : i32, i32, i32
  }
  func.func @transform_1(%arg0: i32) -> (i32, i32) {
    %c0_i32 = arith.constant 0 : i32
    %c0_i32_0 = arith.constant 0 : i32
    %c0_i32_1 = arith.constant 0 : i32
    return %c0_i32, %c0_i32_0 : i32, i32
  }
  func.func @transform_2(%arg0: i32) -> (i32, i32, i32) {
    %c0_i32 = arith.constant 0 : i32
    %c0_i32_0 = arith.constant 0 : i32
    %c0_i32_1 = arith.constant 0 : i32
    return %arg0, %c0_i32, %c0_i32_0 : i32, i32, i32
  }
}

</mosaic_0001>

<llo_original>
// kernel: tpu_custom_call.1
$region0: #{tpu_custom_call.1}
  #allocation0 [shape = 'u32[]', space=smem, size = 0x4, offset = 0x4, fixed_abs, tag = 'smem constant byte address 0x4 - core index']
  #allocation1 [shape = 'u32[144,128]{1,0:T(1,128)}', space=vmem, size = 0x12000, scoped, tag = 'internal scratch']
  %s0 = inlined_call_operand.hbm [shape: bf16[2,8,32], index: 0, kind: input, shape index: {}]
  %s1 = inlined_call_operand.hbm [shape: bf16[32,96], index: 1, kind: input, shape index: {}]
  %s2 = inlined_call_operand.hbm [shape: bf16[2,8,96], index: 2, kind: output, shape index: {}]
  %s3 = sld [smem:[#allocation0]]
  $region49: #{tpu_custom_call.1} parent=0
    _
  %s5 = ssub.s32 1, %s3
  %s6 = scalar_select 0, %s5, %s3
  $region1: #{tpu_custom_call.1} parent=0
    #allocation2 [shape = 'u8[4096]{0}', space=vmem, size = 0x1000, scoped, tag = 'input window, operand 0']
    #allocation3 [shape = 's32[2]{0}', space=sflag, size = 0x8, scoped, tag = 'scoped memory for tpu_custom_call.1']
    #allocation4 [shape = 's32[2]{0}', space=sflag, size = 0x8, scoped, tag = 'scoped memory for tpu_custom_call.1']
    #allocation5 [shape = 'u8[8192]{0}', space=vmem, size = 0x2000, scoped, tag = 'input window, operand 1, single buffered']
    #allocation6 [shape = 's32[1]{0}', space=sflag, size = 0x4, scoped, tag = 'scoped memory for tpu_custom_call.1']
    #allocation7 [shape = 'u8[4096]{0}', space=vmem, size = 0x1000, scoped, tag = 'output window, operand 0']
    %7 = vsyncpa [#allocation3], 0
    %s8 = scalar_lea.sflag [#allocation3], 1
    %9 = vsyncpa %s8, 0
    %10 = vsyncpa [#allocation6], 0
    %11 = vsyncpa [#allocation4], 0
    %s12 = scalar_lea.sflag [#allocation4], 1
    %13 = vsyncpa %s12, 0
    loop: start=0, step=1, limit=4
    $region2: #{tpu_custom_call.1} parent=1 // loop_pre_header
      _
    $region3: #{tpu_custom_call.1} parent=1 // loop_header
      %s15 = sphi 0, %s19
      %p16 = scmp.ge.s32.totalorder %s15, 4
      %s25 = sphi 0, %s27
      %s28 = sphi 0, %s25
      %s29 = sphi 0, %s28
      %s45 = sphi 0, %s29
      %s49 = sphi 0, %s49
      %s51 = sphi 0, %s49
      %s52 = sphi 0, %s51
      %s66 = sphi 0, %s52
      %s72 = sphi 0, %s74
      %s75 = sphi 0, %s72
      %s76 = sphi 0, %s75
      %s92 = sphi 0, %s76
    $region4: #{tpu_custom_call.1} parent=1 // loop_header_branch
      %18 = sbr.rel (%p16) target = $region8
    $region5: #{tpu_custom_call.1} parent=1 // loop_body
      %s20 = ssub.s32 %s15, 1
      %s21 = ssub.s32 %s15, 2
      %s22 = sadd.s32 %s15, 1
      %s23 = ssub.s32 %s15, %s22
      %p24 = scmp.eq.s32.totalorder %s23, 0
      %s26 = sadd.s32 %s25, 1
      %s27 = scalar_select %p24, %s25, %s26
      %p30 = pneg %p24
      %p31 = scmp.eq.s32.totalorder %s15, 1
      %p32 = por %p30, %p31
      %p33 = scmp.ne.s32.totalorder %s25, %s28
      %p34 = scmp.eq.s32.totalorder %s15, 0
      %p35 = por %p33, %p34
      %p36 = scmp.ne.s32.totalorder %s25, %s28
      %p37 = scmp.eq.s32.totalorder %s20, 1
      %p38 = por %p36, %p37
      %p39 = scmp.ne.s32.totalorder %s28, %s29
      %p40 = scmp.eq.s32.totalorder %s20, 0
      %p41 = por %p39, %p40
      %p42 = scmp.ne.s32.totalorder %s28, %s29
      %p43 = scmp.eq.s32.totalorder %s21, 1
      %p44 = por %p42, %p43
      %p46 = scmp.ne.s32.totalorder %s29, %s45
      %p47 = scmp.eq.s32.totalorder %s21, 0
      %p48 = por %p46, %p47
      %s50 = sadd.s32 %s49, 1
      %p53 = scmp.eq.s32.totalorder %s15, 1
      %p54 = scmp.ne.s32.totalorder %s49, %s51
      %p55 = scmp.eq.s32.totalorder %s15, 0
      %p56 = por %p54, %p55
      %p57 = scmp.ne.s32.totalorder %s49, %s51
      %p58 = scmp.eq.s32.totalorder %s20, 1
      %p59 = por %p57, %p58
      %p60 = scmp.ne.s32.totalorder %s51, %s52
      %p61 = scmp.eq.s32.totalorder %s20, 0
      %p62 = por %p60, %p61
      %p63 = scmp.ne.s32.totalorder %s51, %s52
      %p64 = scmp.eq.s32.totalorder %s21, 1
      %p65 = por %p63, %p64
      %p67 = scmp.ne.s32.totalorder %s52, %s66
      %p68 = scmp.eq.s32.totalorder %s21, 0
      %p69 = por %p67, %p68
      %s70 = ssub.s32 %s15, %s22
      %p71 = scmp.eq.s32.totalorder %s70, 0
      %s73 = sadd.s32 %s72, 1
      %s74 = scalar_select %p71, %s72, %s73
      %p77 = pneg %p71
      %p78 = scmp.eq.s32.totalorder %s15, 1
      %p79 = por %p77, %p78
      %p80 = scmp.ne.s32.totalorder %s72, %s75
      %p81 = scmp.eq.s32.totalorder %s15, 0
      %p82 = por %p80, %p81
      %p83 = scmp.ne.s32.totalorder %s72, %s75
      %p84 = scmp.eq.s32.totalorder %s20, 1
      %p85 = por %p83, %p84
      %p86 = scmp.ne.s32.totalorder %s75, %s76
      %p87 = scmp.eq.s32.totalorder %s20, 0
      %p88 = por %p86, %p87
      %p89 = scmp.ne.s32.totalorder %s75, %s76
      %p90 = scmp.eq.s32.totalorder %s21, 1
      %p91 = por %p89, %p90
      %p93 = scmp.ne.s32.totalorder %s76, %s92
      %p94 = scmp.eq.s32.totalorder %s21, 0
      %p95 = por %p93, %p94
      %p96 = scmp.le.s32.totalorder 1, %s15
      %p97 = scmp.lt.s32.totalorder %s15, 3
      %p98 = pnand %p96, %p97
      %p99 = pneg %p98
      // Predicated region
      $region9: #{tpu_custom_call.1} parent=5 // pred_check
        _
      $region10: #{tpu_custom_call.1} parent=5 // pred_check_branch
        %101 = sbr.rel (%p98) target = $region12
      $region11: #{tpu_custom_call.1} parent=5 // pred_region
        %s102 = ssub.s32 %s15, 1
        // Predicated region
        $region13: #{tpu_custom_call.1} parent=11 // pred_check
          %p103 = pneg %p62
        $region14: #{tpu_custom_call.1} parent=11 // pred_check_branch
          %105 = sbr.rel (%p103) target = $region16
        $region15: #{tpu_custom_call.1} parent=11 // pred_region
          %s107 = ssub.s32 256, 256
          %108 = vsyncadd [#allocation6], %s107
          %s109 = sshll.u32 [#allocation5], 4
          %s110 = int_to_ptr.vmem [resolvable:$true] %s109
          %115 = dma.hbm_to_vmem [thread:$0]  %s1, 256, %s110, [#allocation6], 64, 64, 4
        $region16: #{tpu_custom_call.1} parent=11 // pred_fallthru
          _
      $region12: #{tpu_custom_call.1} parent=5 // pred_fallthru
        _
      %p116 = scmp.lt.s32.totalorder %s15, 2
      // Predicated region
      $region17: #{tpu_custom_call.1} parent=5 // pred_check
        %p117 = pneg %p116
      $region18: #{tpu_custom_call.1} parent=5 // pred_check_branch
        %119 = sbr.rel (%p117) target = $region20
      $region19: #{tpu_custom_call.1} parent=5 // pred_region
        // Predicated region
        $region21: #{tpu_custom_call.1} parent=19 // pred_check
          %p120 = pneg %p35
        $region22: #{tpu_custom_call.1} parent=19 // pred_check_branch
          %122 = sbr.rel (%p120) target = $region24
        $region23: #{tpu_custom_call.1} parent=19 // pred_region
          %s123 = sand.u32 %s25, 1
          %s124 = scalar_lea.sflag [#allocation3], %s123
          %s125 = sand.u32 %s25, 1
          %s126 = smul.addr %s125, 4
          %s127 = scalar_lea.vmem [#allocation2], %s126
          %s129 = ssub.s32 64, 64
          %130 = vsyncadd %s124, %s129
          %s131 = smul.addr %s15, 64
          %s132 = scalar_lea.hbm %s0, %s131
          %s134 = sshll.u32 %s127, 4
          %s135 = int_to_ptr.vmem [resolvable:$true] %s134
          %137 = dma.hbm_to_vmem [thread:$0]  %s132, 64, %s135, %s124
        $region24: #{tpu_custom_call.1} parent=19 // pred_fallthru
          _
      $region20: #{tpu_custom_call.1} parent=5 // pred_fallthru
        _
      %p138 = scmp.le.s32.totalorder 1, %s15
      %p139 = scmp.lt.s32.totalorder %s15, 3
      %p140 = pnand %p138, %p139
      %p141 = pneg %p140
      // Predicated region
      $region25: #{tpu_custom_call.1} parent=5 // pred_check
        _
      $region26: #{tpu_custom_call.1} parent=5 // pred_check_branch
        %143 = sbr.rel (%p140) target = $region28
      $region27: #{tpu_custom_call.1} parent=5 // pred_region
        %s144 = ssub.s32 %s15, 1
        %s145 = sand.u32 %s28, 1
        %s146 = scalar_lea.sflag [#allocation3], %s145
        %s147 = sand.u32 %s28, 1
        %s148 = smul.addr %s147, 4
        %s149 = scalar_lea.vmem [#allocation2], %s148
        // Predicated region
        $region29: #{tpu_custom_call.1} parent=27 // pred_check
          %p150 = pneg %p41
        $region30: #{tpu_custom_call.1} parent=27 // pred_check_branch
          %152 = sbr.rel (%p150) target = $region32
        $region31: #{tpu_custom_call.1} parent=27 // pred_region
          %153 = dma.done %s146, 64
        $region32: #{tpu_custom_call.1} parent=27 // pred_fallthru
          _
        // Predicated region
        $region33: #{tpu_custom_call.1} parent=27 // pred_check
          %p154 = pneg %p62
        $region34: #{tpu_custom_call.1} parent=27 // pred_check_branch
          %156 = sbr.rel (%p154) target = $region36
        $region35: #{tpu_custom_call.1} parent=27 // pred_region
          %157 = dma.done [#allocation6], 256
        $region36: #{tpu_custom_call.1} parent=27 // pred_fallthru
          _
        %s158 = sand.u32 %s28, 1
        %s159 = scalar_lea.sflag [#allocation3], %s158
        %s160 = sand.u32 %s28, 1
        %s161 = smul.addr %s160, 4
        %s162 = scalar_lea.vmem [#allocation2], %s161
        %p163 = pneg %p41
        %p164 = pneg %p38
        %p165 = pneg %p62
        %p166 = pneg %p59
        %p167 = pneg %p88
        %p168 = pneg %p85
        %s169 = sand.u32 %s75, 1
        %s170 = scalar_lea.sflag [#allocation4], %s169
        %s171 = sand.u32 %s75, 1
        %s172 = smul.addr %s171, 4
        %s173 = scalar_lea.vmem [#allocation7], %s172
        %v175 = vld [vmem:[%s149] sm:$0xf]
        %v176 = vld [vmem:[#allocation5] sm:$0xf]
        %v177 = vld [vmem:[#allocation5 + $0x4] sm:$0xf]
        %v178 = vld [vmem:[#allocation5 + $0x8] sm:$0xf]
        %v179 = vld [vmem:[#allocation5 + $0xc] sm:$0xf]
        %v184 = vunpack.c.l.b16 %v176
        %v185 = vunpack.c.l.b16 %v177
        %v186 = vunpack.c.l.b16 %v178
        %v187 = vunpack.c.l.b16 %v179
        %v188 = vpack.c.b16 %v185, %v184
        %v189 = vpack.c.b16 %v187, %v186
        %vm192 = vcmask 261120
        %v194 = vsel %vm192, %v175, 0
        %196 = vmatprep.subr.bf16.mxu0 0
        %197 = vmatpush1.bf16.msra.mxu0 %v188
        %198 = vmatprep.subr.bf16.mxu0 0
        %199 = vmatpush1.bf16.msra.mxu0 %v189
        %200 = vmatprep.subr.bf16.mxu0 0
        %201 = vmatpush1.bf16.msra.mxu0 0
        %202 = vmatprep.subr.bf16.mxu0 0
        %203 = vmatpush1.bf16.msra.mxu0 0
        %204 = vmatprep.subr.bf16.mxu0 0
        %205 = vmatpush1.bf16.msra.mxu0 0
        %206 = vmatprep.subr.bf16.mxu0 0
        %207 = vmatpush1.bf16.msra.mxu0 0
        %208 = vmatprep.subr.bf16.mxu0 0
        %209 = vmatpush1.bf16.msra.mxu0 0
        %210 = vmatprep.subr.bf16.mxu0 0
        %211 = vmatpush1.bf16.msra.mxu0 0
        %212 = vmatprep.subr.bf16.mxu0 0
        %213 = vmatpush1.bf16.msra.mxu0 0
        %214 = vmatprep.subr.bf16.mxu0 0
        %215 = vmatpush1.bf16.msra.mxu0 0
        %216 = vmatprep.subr.bf16.mxu0 0
        %217 = vmatpush1.bf16.msra.mxu0 0
        %218 = vmatprep.subr.bf16.mxu0 0
        %219 = vmatpush1.bf16.msra.mxu0 0
        %220 = vmatprep.subr.bf16.mxu0 0
        %221 = vmatpush1.bf16.msra.mxu0 0
        %222 = vmatprep.subr.bf16.mxu0 0
        %223 = vmatpush1.bf16.msra.mxu0 0
        %224 = vmatprep.subr.bf16.mxu0 0
        %225 = vmatpush1.bf16.msra.mxu0 0
        %226 = vmatprep.subr.bf16.mxu0 0
        %227 = vmatpush1.bf16.msra.mxu0 0
        %228 = vmatprep.mubr.bf16.mxu0 0
        %229 = vmatmul.mubr.bf16.gmra.mrb[0].mxu0 %v194
        %v230 = vpop.f32.mrb[0].mxu0
        %v231 = vadd.f32 0.0, %v230
        %v232 = vpop.f32.mrb[0].mxu0
        %v233 = vpop.f32.mrb[0].mxu0
        %v234 = vpop.f32.mrb[0].mxu0
        %235 = vdwg.mxu0
        %v236 = vpack.c.bf16 %v231, %v231
        %vm237 = vcmask 781312
        %238 = vst.msk [vmem:[%s173] sm:$0xf] %vm237, %v236
        %s239 = sand.u32 %s75, 1
        %s240 = scalar_lea.sflag [#allocation4], %s239
        %s241 = sand.u32 %s75, 1
        %s242 = smul.addr %s241, 4
        %s243 = scalar_lea.vmem [#allocation7], %s242
        // Predicated region
        $region37: #{tpu_custom_call.1} parent=27 // pred_check
          %p244 = pneg %p85
        $region38: #{tpu_custom_call.1} parent=27 // pred_check_branch
          %246 = sbr.rel (%p244) target = $region40
        $region39: #{tpu_custom_call.1} parent=27 // pred_region
          %s248 = ssub.s32 64, 64
          %249 = vsyncadd %s240, %s248
          %s250 = smul.addr %s20, 64
          %s251 = scalar_lea.hbm %s2, %s250
          %s253 = sshll.u32 %s243, 4
          %s254 = int_to_ptr.vmem [resolvable:$true] %s253
          %256 = dma.vmem_to_hbm [thread:$0]  %s254, 64, %s251, %s240
        $region40: #{tpu_custom_call.1} parent=27 // pred_fallthru
          _
      $region28: #{tpu_custom_call.1} parent=5 // pred_fallthru
        _
      %p257 = scmp.le.s32.totalorder 2, %s15
      // Predicated region
      $region41: #{tpu_custom_call.1} parent=5 // pred_check
        %p258 = pneg %p257
      $region42: #{tpu_custom_call.1} parent=5 // pred_check_branch
        %260 = sbr.rel (%p258) target = $region44
      $region43: #{tpu_custom_call.1} parent=5 // pred_region
        %s261 = ssub.s32 %s15, 2
        // Predicated region
        $region45: #{tpu_custom_call.1} parent=43 // pred_check
          %p262 = pneg %p91
        $region46: #{tpu_custom_call.1} parent=43 // pred_check_branch
          %264 = sbr.rel (%p262) target = $region48
        $region47: #{tpu_custom_call.1} parent=43 // pred_region
          %s265 = sand.u32 %s76, 1
          %s266 = scalar_lea.sflag [#allocation4], %s265
          %s267 = sand.u32 %s76, 1
          %s268 = smul.addr %s267, 4
          %s269 = scalar_lea.vmem [#allocation7], %s268
          %270 = dma.done %s266, 64
        $region48: #{tpu_custom_call.1} parent=43 // pred_fallthru
          _
      $region44: #{tpu_custom_call.1} parent=5 // pred_fallthru
        _
    $region6: #{tpu_custom_call.1} parent=1 // loop_footer
      %s19 = sadd.s32 1, %s15
    $region7: #{tpu_custom_call.1} parent=1 // loop_footer_branch
      %14 = sbr.rel target = $region3
    $region8: #{tpu_custom_call.1} parent=1 // loop_exit
      _
    %271 = vsyncpa [#allocation3], 1
    %s272 = scalar_lea.sflag [#allocation3], 1
    %273 = vsyncpa %s272, 1
    %274 = vsyncpa [#allocation6], 1
    %275 = vsyncpa [#allocation4], 1
    %s276 = scalar_lea.sflag [#allocation4], 1
    %277 = vsyncpa %s276, 1

</llo_original>
